<compile_context>
chip_gen: v6e
topology: v6e:2x2x1
jax: 0.10.0
libtpu: 0.0.40
codegen_flags: <defaults>
</compile_context>

<pallas_src>
from functools import partial

import jax
import jax.numpy as jnp
import numpy as np
from jax import lax
from jax.experimental import pallas as pl
from jax.experimental.pallas import tpu as pltpu


def _cls_sim_kernel(x_ref, wsel_ref, o_ref, acc_ref, *, hw, hw_tile, needs_mask):
    # x_ref    : (1, R_half, HW_TILE)  one group / row-half / HW tile (native dtype)
    # wsel_ref : (R_half, C)           wsel[r, c] = fc_weight[row // C] * (row % C == c)
    # o_ref    : (1, 1, 1, C)          partial fc logits for this (group, half)
    # acc_ref  : (R_half, 1)           lane-reduced running-max (VMEM scratch)
    k = pl.program_id(2)
    kt = pl.num_programs(2)

    @pl.when(k == 0)
    def _init():
        acc_ref[...] = jnp.full(acc_ref.shape, -jnp.inf, dtype=acc_ref.dtype)

    def _accumulate(mask_tail):
        x = x_ref[0].astype(jnp.float32)                   # in-kernel upcast (bf16 path)
        if mask_tail:                                      # trace-time flag
            lane = lax.broadcasted_iota(jnp.int32, x.shape, 1)
            x = jnp.where(k * hw_tile + lane < hw, x, -jnp.inf)
        tile_max = jnp.max(x, axis=-1, keepdims=True)      # (R_half, 1) XLU reduce
        acc_ref[...] = jnp.maximum(acc_ref[...], tile_max)

    if needs_mask:
        @pl.when(k < kt - 1)
        def _bulk():
            _accumulate(False)

        @pl.when(k == kt - 1)
        def _tail():
            _accumulate(True)
    else:
        _accumulate(False)

    @pl.when(k == kt - 1)
    def _finalize():
        pooled = acc_ref[...]                                             # (R_half, 1)
        # fc(64 -> 1) per channel as VPU multiply + one sublane reduce.
        partial_logits = jnp.sum(pooled * wsel_ref[...], axis=0,
                                 keepdims=True)                           # (1, C)
        o_ref[0, 0] = partial_logits


def classification_sim(x, fc_weight, fc_bias, *, hw_tile=None):
    """x: (B, C, H, W), B % 64 == 0. Returns sigmoid(fc(maxpool(x))) of shape (B//64, C)."""
    B, C, H, W = x.shape
    assert B % 64 == 0, "Classification_sim requires batch divisible by 64"
    G = B // 64
    R = 64 * C
    HW = H * W
    itemsize = int(jnp.dtype(x.dtype).itemsize)

    # Row split: with G == 1 the only parallel axis would have extent 1, so on
    # v7x one TensorCore would idle; split the R rows into two disjoint halves.
    rsplit = 2 if G == 1 else 1
    R_half = R // rsplit                      # 32*C or 64*C -> always a multiple of 8

    # (B, C, H, W) -> (G, 64*C, HW): contiguous reshape, row r = j*C + c.
    # Keep the native dtype (no wrapper-side astype / extra HBM pass).
    x_g = x.reshape(G, R, HW)

    # Fold the Linear(64, 1) weight into a (R, C) selection matrix so the fc
    # becomes a broadcast-multiply + sublane reduce (no MXU in the epilogue).
    # TODO(synk): for C >= ~32 this is O(64*C^2) mostly-zero VMEM; switch to a
    # (R, 1) weight column + grouped-row contraction instead.
    w = fc_weight.reshape(64).astype(jnp.float32)
    row_w = jnp.repeat(w, C)                                              # w[r // C]
    onehot = (jnp.arange(R, dtype=jnp.int32)[:, None] % C
              == jnp.arange(C, dtype=jnp.int32)[None, :])
    wsel = row_w[:, None] * onehot.astype(jnp.float32)                    # (R, C)

    # HW tile: largest lane-dense tile such that the double-buffered input
    # (the dominant term now the acc slab is gone) fits comfortably in scoped
    # VMEM on every generation (smaller target on 64 MiB v7x parts).
    try:
        vmem_cap = pltpu.get_tpu_info().vmem_capacity_bytes
    except Exception:
        vmem_cap = 64 << 20
    target_bytes = (4 << 20) if vmem_cap >= (96 << 20) else (2 << 20)
    if hw_tile is None:
        hw_tile = max(128, ((target_bytes // (R_half * itemsize)) // 128) * 128)
    if hw_tile >= HW:
        hw_tile = HW                          # single full-extent block (any width)
    else:
        assert hw_tile % 128 == 0, "hw_tile must be a multiple of 128"
    kt = pl.cdiv(HW, hw_tile)
    needs_mask = (HW % hw_tile) != 0

    # Explicit scoped-VMEM budget: 2x input block + 2x wsel + acc + output pad.
    need = (2 * R_half * hw_tile * itemsize
            + 2 * R_half * C * 4
            + R_half * 128 * 4
            + 2 * 8 * 128 * 4)
    vmem_limit = int(min(max(need + (4 << 20), 16 << 20), 48 << 20))

    kernel = partial(_cls_sim_kernel, hw=HW, hw_tile=hw_tile,
                     needs_mask=needs_mask)

    partial_out = pl.pallas_call(
        kernel,
        out_shape=jax.ShapeDtypeStruct((G, rsplit, 1, C), jnp.float32),
        grid_spec=pltpu.PrefetchScalarGridSpec(
            num_scalar_prefetch=0,
            grid=(G, rsplit, kt),
            in_specs=[
                pl.BlockSpec((1, R_half, hw_tile), lambda g, s, k: (g, s, k)),
                pl.BlockSpec((R_half, C), lambda g, s, k: (s, 0)),
            ],
            out_specs=pl.BlockSpec((1, 1, 1, C), lambda g, s, k: (g, s, 0, 0)),
            scratch_shapes=[pltpu.VMEM((R_half, 1), jnp.float32)],
        ),
        compiler_params=pltpu.CompilerParams(
            dimension_semantics=("parallel", "parallel", "arbitrary"),
            vmem_limit_bytes=vmem_limit),
        cost_estimate=pl.CostEstimate(
            flops=int(x_g.size) + 2 * R * C * G,
            transcendentals=0,
            bytes_accessed=int(x_g.size) * itemsize + R * C * 4
                           + G * rsplit * C * 4),
    )(x_g, wsel)

    # Tiny XLA epilogue: sum the row-split partials, add bias, sigmoid.
    logits = (partial_out.reshape(G, rsplit, C).sum(axis=1)
              + fc_bias.reshape(()).astype(jnp.float32))
    return jax.nn.sigmoid(logits)


def _reference(x, fc_weight, fc_bias):
    # Pure-JAX mirror of the PyTorch forward (4-D path), computed in f32.
    B, C, H, W = x.shape
    xf = x.astype(jnp.float32)
    pooled = jnp.max(xf.reshape(B, C, H * W), axis=-1)                    # (B, C)
    outs = []
    for i in range(C):
        col = pooled[:, i].reshape(-1, 64)                                # (G, 64)
        outs.append(col @ fc_weight.reshape(64, 1).astype(jnp.float32)
                    + fc_bias.astype(jnp.float32))                        # (G, 1)
    return jax.nn.sigmoid(jnp.concatenate(outs, axis=1))                  # (G, C)


if __name__ == "__main__":
    key = jax.random.PRNGKey(0)
    k_x, k_w, k_b, k_x2, k_w2, k_b2 = jax.random.split(key, 6)

    # Test 1: G == 1 -> row-split parallel axis, single full-extent HW tile.
    B, C, H, W = 64, 4, 16, 16
    x = jax.random.normal(k_x, (B, C, H, W), dtype=jnp.float32)
    fc_w = jax.random.normal(k_w, (1, 64), dtype=jnp.float32) * 0.1       # Linear(64,1).weight
    fc_b = jax.random.normal(k_b, (1,), dtype=jnp.float32) * 0.1          # Linear(64,1).bias
    out = jax.block_until_ready(classification_sim(x, fc_w, fc_b))
    ref = _reference(x, fc_w, fc_b)
    np.testing.assert_allclose(np.asarray(out), np.asarray(ref),
                               rtol=1e-5, atol=1e-5)
    assert out.shape == (B // 64, C)

    # Test 2: multi-group, tiled HW reduction with a masked remainder tile.
    B2, C2, H2, W2 = 128, 5, 18, 18       # HW = 324 -> tiles of 128 + masked tail
    x2 = jax.random.normal(k_x2, (B2, C2, H2, W2), dtype=jnp.float32)
    fc_w2 = jax.random.normal(k_w2, (1, 64), dtype=jnp.float32) * 0.1
    fc_b2 = jax.random.normal(k_b2, (1,), dtype=jnp.float32) * 0.1
    out2 = jax.block_until_ready(
        classification_sim(x2, fc_w2, fc_b2, hw_tile=128))
    ref2 = _reference(x2, fc_w2, fc_b2)
    np.testing.assert_allclose(np.asarray(out2), np.asarray(ref2),
                               rtol=1e-5, atol=1e-5)
    assert out2.shape == (B2 // 64, C2)

    # Test 3: native bf16 streaming path (no wrapper cast; in-kernel upcast).
    x3 = x.astype(jnp.bfloat16)
    out3 = jax.block_until_ready(classification_sim(x3, fc_w, fc_b))
    ref3 = _reference(x3, fc_w, fc_b)
    np.testing.assert_allclose(np.asarray(out3), np.asarray(ref3),
                               rtol=1e-4, atol=1e-4)

    print("KERNEL_OK")
</pallas_src>

<mosaic_0001>
module attributes {stable_mosaic.version = 11 : i64} {
  func.func @_cls_sim_kernel(%arg0: i32, %arg1: i32, %arg2: i32, %arg3: memref<1x128x256xf32, #tpu.memory_space<vmem>>, %arg4: memref<128x4xf32, #tpu.memory_space<vmem>>, %arg5: memref<1x1x1x4xf32, #tpu.memory_space<vmem>>, %arg6: memref<128x1xf32, #tpu.memory_space<vmem>>) attributes {dimension_semantics = [#tpu.dimension_semantics<parallel>, #tpu.dimension_semantics<parallel>, #tpu.dimension_semantics<arbitrary>], iteration_bounds = array<i64: 1, 2, 1>, scalar_prefetch = 0 : i64, scratch_operands = 1 : i64, tpu.core_type = #tpu.core_type<tc>, window_params = [{transform_indices = @transform_0, window_bounds = array<i64: 1, 128, 256>}, {transform_indices = @transform_1, window_bounds = array<i64: 128, 4>}, {transform_indices = @transform_2, window_bounds = array<i64: 1, 1, 1, 4>}]} {
    %c0_i32 = arith.constant 0 : i32
    %0 = arith.cmpi eq, %arg2, %c0_i32 : i32
    %1 = arith.extui %0 : i1 to i32
    %c0_i32_0 = arith.constant 0 : i32
    %2 = arith.cmpi ne, %1, %c0_i32_0 : i32
    scf.if %2 {
      %cst_9 = arith.constant 0xFF800000 : f32
      %13 = vector.broadcast %cst_9 : f32 to vector<128x1xf32>
      %c0_10 = arith.constant 0 : index
      %c0_11 = arith.constant 0 : index
      %14 = vector.load %arg6[%c0_10, %c0_11] : memref<128x1xf32, #tpu.memory_space<vmem>>, vector<128x1xf32>
      tpu.vector_store %arg6[%c0_10, %c0_11], %13 {strides = array<i32>} : memref<128x1xf32, #tpu.memory_space<vmem>>, vector<128x1xf32>,
    } else {
    }
    %c0 = arith.constant 0 : index
    %c0_1 = arith.constant 0 : index
    %c0_2 = arith.constant 0 : index
    %3 = vector.load %arg3[%c0, %c0_1, %c0_2] : memref<1x128x256xf32, #tpu.memory_space<vmem>>, vector<1x128x256xf32>
    %4 = vector.shape_cast %3 : vector<1x128x256xf32> to vector<128x256xf32>
    %cst = arith.constant dense<0xFF800000> : vector<128xf32>
    %5 = vector.multi_reduction <maximumf>, %4, %cst [1] : vector<128x256xf32> to vector<128xf32>
    %6 = vector.shape_cast %5 : vector<128xf32> to vector<128x1xf32>
    %c0_3 = arith.constant 0 : index
    %c0_4 = arith.constant 0 : index
    %7 = vector.load %arg6[%c0_3, %c0_4] : memref<128x1xf32, #tpu.memory_space<vmem>>, vector<128x1xf32>
    %8 = arith.maximumf %7, %6 : vector<128x1xf32>
    %c0_5 = arith.constant 0 : index
    %c0_6 = arith.constant 0 : index
    %9 = vector.load %arg6[%c0_5, %c0_6] : memref<128x1xf32, #tpu.memory_space<vmem>>, vector<128x1xf32>
    tpu.vector_store %arg6[%c0_5, %c0_6], %8 {strides = array<i32>} : memref<128x1xf32, #tpu.memory_space<vmem>>, vector<128x1xf32>,
    %c0_i32_7 = arith.constant 0 : i32
    %10 = arith.cmpi eq, %arg2, %c0_i32_7 : i32
    %11 = arith.extui %10 : i1 to i32
    %c0_i32_8 = arith.constant 0 : i32
    %12 = arith.cmpi ne, %11, %c0_i32_8 : i32
    scf.if %12 {
      %c0_9 = arith.constant 0 : index
      %c0_10 = arith.constant 0 : index
      %13 = vector.load %arg6[%c0_9, %c0_10] : memref<128x1xf32, #tpu.memory_space<vmem>>, vector<128x1xf32>
      %c0_11 = arith.constant 0 : index
      %c0_12 = arith.constant 0 : index
      %14 = vector.load %arg4[%c0_11, %c0_12] : memref<128x4xf32, #tpu.memory_space<vmem>>, vector<128x4xf32>
      %15 = vector.broadcast %13 : vector<128x1xf32> to vector<128x4xf32>
      %16 = arith.mulf %15, %14 : vector<128x4xf32>
      %cst_13 = arith.constant dense<0.000000e+00> : vector<4xf32>
      %17 = vector.multi_reduction <add>, %16, %cst_13 [0] : vector<128x4xf32> to vector<4xf32>
      %18 = vector.shape_cast %17 : vector<4xf32> to vector<1x4xf32>
      %c0_14 = arith.constant 0 : index
      %c0_15 = arith.constant 0 : index
      %c0_16 = arith.constant 0 : index
      %c0_17 = arith.constant 0 : index
      %19 = vector.load %arg5[%c0_14, %c0_15, %c0_16, %c0_17] : memref<1x1x1x4xf32, #tpu.memory_space<vmem>>, vector<1x1x1x4xf32>
      %20 = vector.shape_cast %19 : vector<1x1x1x4xf32> to vector<1x4xf32>
      %21 = vector.shape_cast %18 : vector<1x4xf32> to vector<1x1x1x4xf32>
      tpu.vector_store %arg5[%c0_14, %c0_15, %c0_16, %c0_17], %21 {strides = array<i32>} : memref<1x1x1x4xf32, #tpu.memory_space<vmem>>, vector<1x1x1x4xf32>,
    } else {
    }
    return
  }
  func.func @transform_0(%arg0: i32, %arg1: i32, %arg2: i32) -> (i32, i32, i32) {
    %c0_i32 = arith.constant 0 : i32
    return %arg0, %arg1, %arg2 : i32, i32, i32
  }
  func.func @transform_1(%arg0: i32, %arg1: i32, %arg2: i32) -> (i32, i32) {
    %c0_i32 = arith.constant 0 : i32
    %c0_i32_0 = arith.constant 0 : i32
    return %arg1, %c0_i32 : i32, i32
  }
  func.func @transform_2(%arg0: i32, %arg1: i32, %arg2: i32) -> (i32, i32, i32, i32) {
    %c0_i32 = arith.constant 0 : i32
    %c0_i32_0 = arith.constant 0 : i32
    %c0_i32_1 = arith.constant 0 : i32
    return %arg0, %arg1, %c0_i32, %c0_i32_0 : i32, i32, i32, i32
  }
}

</mosaic_0001>

<llo_original>
// kernel: tpu_custom_call.1
$region0: #{tpu_custom_call.1}
  #allocation0 [shape = 'u32[]', space=smem, size = 0x4, offset = 0x4, fixed_abs, tag = 'smem constant byte address 0x4 - core index']
  #allocation1 [shape = 'u32[144,128]{1,0:T(1,128)}', space=vmem, size = 0x12000, scoped, tag = 'internal scratch']
  #allocation2 [shape = 'f32[128,1]{1,0:T(8,128)}', space=vmem, size = 0x10000, scoped, tag = 'scratch operand']
  %s0 = inlined_call_operand.hbm [shape: f32[1,256,256], index: 0, kind: input, shape index: {}]
  %s1 = inlined_call_operand.vmem [shape: f32[256,4], index: 1, kind: input, shape index: {}]
  %s2 = inlined_call_operand.hbm [shape: f32[1,2,1,4], index: 2, kind: output, shape index: {}]
  %s3 = sld [smem:[#allocation0]]
  $region53: #{tpu_custom_call.1} parent=0
    _
  %s5 = ssub.s32 1, %s3
  %s6 = scalar_select 0, %s5, %s3
  $region1: #{tpu_custom_call.1} parent=0
    #allocation3 [shape = 'u8[262144]{0}', space=vmem, size = 0x40000, scoped, tag = 'input window, operand 0']
    #allocation4 [shape = 's32[2]{0}', space=sflag, size = 0x8, scoped, tag = 'scoped memory for tpu_custom_call.1']
    #allocation5 [shape = 's32[2]{0}', space=sflag, size = 0x8, scoped, tag = 'scoped memory for tpu_custom_call.1']
    #allocation6 [shape = 'u8[1024]{0}', space=vmem, size = 0x400, scoped, tag = 'output window, operand 0']
    %7 = vsyncpa [#allocation4], 0
    %s8 = scalar_lea.sflag [#allocation4], 1
    %9 = vsyncpa %s8, 0
    %10 = vsyncpa [#allocation5], 0
    %s11 = scalar_lea.sflag [#allocation5], 1
    %12 = vsyncpa %s11, 0
    loop: start=0, step=1, limit=4
    $region2: #{tpu_custom_call.1} parent=1 // loop_pre_header
      _
    $region3: #{tpu_custom_call.1} parent=1 // loop_header
      %s14 = sphi 0, %s18
      %p15 = scmp.ge.s32.totalorder %s14, 4
      %s21 = sphi 0, %s40
      %s22 = sphi 0, %s36
      %s23 = sphi 0, %s32
      %s24 = sphi 0, %s21
      %s25 = sphi 0, %s22
      %s26 = sphi 0, %s23
      %s27 = sphi 0, %s24
      %s28 = sphi 0, %s25
      %s29 = sphi 0, %s26
      %s47 = sphi 0, %s49
      %s50 = sphi 0, %s47
      %s51 = sphi 0, %s50
      %s67 = sphi 0, %s51
      %s73 = sphi 0, %s75
      %s76 = sphi 0, %s73
      %s77 = sphi 0, %s76
      %s93 = sphi 0, %s77
      %s101 = sphi 0, %s103
      %s104 = sphi 0, %s101
      %s105 = sphi 0, %s104
      %s121 = sphi 0, %s105
    $region4: #{tpu_custom_call.1} parent=1 // loop_header_branch
      %17 = sbr.rel (%p15) target = $region8
    $region5: #{tpu_custom_call.1} parent=1 // loop_body
      %s19 = ssub.s32 %s14, 1
      %s20 = ssub.s32 %s14, 2
      %s30 = sadd.s32 1, %s23
      %p31 = scmp.ge.s32.totalorder %s30, 1
      %s32 = scalar_select %p31, 0, %s30
      %s33 = sadd.s32 1, %s22
      %s34 = scalar_select %p31, %s33, %s22
      %p35 = scmp.ge.s32.totalorder %s34, 2
      %s36 = scalar_select %p35, 0, %s34
      %s37 = sadd.s32 1, %s21
      %s38 = scalar_select %p35, %s37, %s21
      %p39 = scmp.ge.s32.totalorder %s38, 1
      %s40 = scalar_select %p39, 0, %s38
      %s41 = ssub.s32 %s21, %s40
      %s42 = ssub.s32 %s22, %s36
      %s43 = sor.u32 %s41, %s42
      %s44 = ssub.s32 %s23, %s32
      %s45 = sor.u32 %s43, %s44
      %p46 = scmp.eq.s32.totalorder %s45, 0
      %s48 = sadd.s32 %s47, 1
      %s49 = scalar_select %p46, %s47, %s48
      %p52 = pneg %p46
      %p53 = scmp.eq.s32.totalorder %s14, 1
      %p54 = por %p52, %p53
      %p55 = scmp.ne.s32.totalorder %s47, %s50
      %p56 = scmp.eq.s32.totalorder %s14, 0
      %p57 = por %p55, %p56
      %p58 = scmp.ne.s32.totalorder %s47, %s50
      %p59 = scmp.eq.s32.totalorder %s19, 1
      %p60 = por %p58, %p59
      %p61 = scmp.ne.s32.totalorder %s50, %s51
      %p62 = scmp.eq.s32.totalorder %s19, 0
      %p63 = por %p61, %p62
      %p64 = scmp.ne.s32.totalorder %s50, %s51
      %p65 = scmp.eq.s32.totalorder %s20, 1
      %p66 = por %p64, %p65
      %p68 = scmp.ne.s32.totalorder %s51, %s67
      %p69 = scmp.eq.s32.totalorder %s20, 0
      %p70 = por %p68, %p69
      %s71 = ssub.s32 %s22, %s36
      %p72 = scmp.eq.s32.totalorder %s71, 0
      %s74 = sadd.s32 %s73, 1
      %s75 = scalar_select %p72, %s73, %s74
      %p78 = pneg %p72
      %p79 = scmp.eq.s32.totalorder %s14, 1
      %p80 = por %p78, %p79
      %p81 = scmp.ne.s32.totalorder %s73, %s76
      %p82 = scmp.eq.s32.totalorder %s14, 0
      %p83 = por %p81, %p82
      %p84 = scmp.ne.s32.totalorder %s73, %s76
      %p85 = scmp.eq.s32.totalorder %s19, 1
      %p86 = por %p84, %p85
      %p87 = scmp.ne.s32.totalorder %s76, %s77
      %p88 = scmp.eq.s32.totalorder %s19, 0
      %p89 = por %p87, %p88
      %p90 = scmp.ne.s32.totalorder %s76, %s77
      %p91 = scmp.eq.s32.totalorder %s20, 1
      %p92 = por %p90, %p91
      %p94 = scmp.ne.s32.totalorder %s77, %s93
      %p95 = scmp.eq.s32.totalorder %s20, 0
      %p96 = por %p94, %p95
      %s97 = ssub.s32 %s21, %s40
      %s98 = ssub.s32 %s22, %s36
      %s99 = sor.u32 %s97, %s98
      %p100 = scmp.eq.s32.totalorder %s99, 0
      %s102 = sadd.s32 %s101, 1
      %s103 = scalar_select %p100, %s101, %s102
      %p106 = pneg %p100
      %p107 = scmp.eq.s32.totalorder %s14, 1
      %p108 = por %p106, %p107
      %p109 = scmp.ne.s32.totalorder %s101, %s104
      %p110 = scmp.eq.s32.totalorder %s14, 0
      %p111 = por %p109, %p110
      %p112 = scmp.ne.s32.totalorder %s101, %s104
      %p113 = scmp.eq.s32.totalorder %s19, 1
      %p114 = por %p112, %p113
      %p115 = scmp.ne.s32.totalorder %s104, %s105
      %p116 = scmp.eq.s32.totalorder %s19, 0
      %p117 = por %p115, %p116
      %p118 = scmp.ne.s32.totalorder %s104, %s105
      %p119 = scmp.eq.s32.totalorder %s20, 1
      %p120 = por %p118, %p119
      %p122 = scmp.ne.s32.totalorder %s105, %s121
      %p123 = scmp.eq.s32.totalorder %s20, 0
      %p124 = por %p122, %p123
      %p125 = scmp.le.s32.totalorder 1, %s14
      %p126 = scmp.lt.s32.totalorder %s14, 3
      %p127 = pnand %p125, %p126
      %p128 = pneg %p127
      // Predicated region
      $region9: #{tpu_custom_call.1} parent=5 // pred_check
        _
      $region10: #{tpu_custom_call.1} parent=5 // pred_check_branch
        %130 = sbr.rel (%p127) target = $region12
      $region11: #{tpu_custom_call.1} parent=5 // pred_region
        %s131 = ssub.s32 %s14, 1
      $region12: #{tpu_custom_call.1} parent=5 // pred_fallthru
        _
      %p132 = scmp.lt.s32.totalorder %s14, 2
      // Predicated region
      $region13: #{tpu_custom_call.1} parent=5 // pred_check
        %p133 = pneg %p132
      $region14: #{tpu_custom_call.1} parent=5 // pred_check_branch
        %135 = sbr.rel (%p133) target = $region16
      $region15: #{tpu_custom_call.1} parent=5 // pred_region
        // Predicated region
        $region17: #{tpu_custom_call.1} parent=15 // pred_check
          %p136 = pneg %p57
        $region18: #{tpu_custom_call.1} parent=15 // pred_check_branch
          %138 = sbr.rel (%p136) target = $region20
        $region19: #{tpu_custom_call.1} parent=15 // pred_region
          %s139 = sand.u32 %s47, 1
          %s140 = scalar_lea.sflag [#allocation4], %s139
          %s141 = sand.u32 %s47, 1
          %s142 = smul.addr %s141, 256
          %s143 = scalar_lea.vmem [#allocation3], %s142
          %s144 = smul.u32 16, %s22
          %s145 = smul.u32 2, %s23
          %s147 = ssub.s32 4096, 4096
          %148 = vsyncadd %s140, %s147
          %s149 = smul.addr %s144, 2
          %s150 = sadd.s32 %s145, %s149
          %s151 = smul.addr %s21, 64
          %s152 = sadd.s32 %s150, %s151
          %s153 = smul.addr %s152, 128
          %s154 = scalar_lea.hbm %s0, %s153
          %s155 = sshll.u32 %s143, 4
          %s156 = int_to_ptr.vmem [resolvable:$true] %s155
          %161 = dma.hbm_to_vmem [thread:$0]  %s154, 4096, %s156, %s140, 256, 256, 16
        $region20: #{tpu_custom_call.1} parent=15 // pred_fallthru
          _
        // Predicated region
        $region21: #{tpu_custom_call.1} parent=15 // pred_check
          %p162 = pneg %p83
        $region22: #{tpu_custom_call.1} parent=15 // pred_check_branch
          %164 = sbr.rel (%p162) target = $region24
        $region23: #{tpu_custom_call.1} parent=15 // pred_region
          %s165 = smul.u32 16, %s22
          %p166 = scmp.lt.s32.totalorder %s165, 31
          %s167 = scalar_select %p166, %s165, 31
          %s168 = smul.addr %s167, 8
          %s169 = scalar_lea.vmem %s1, %s168
          %s170 = smul.u32 16, %s22
        $region24: #{tpu_custom_call.1} parent=15 // pred_fallthru
          _
      $region16: #{tpu_custom_call.1} parent=5 // pred_fallthru
        _
      %p171 = scmp.le.s32.totalorder 1, %s14
      %p172 = scmp.lt.s32.totalorder %s14, 3
      %p173 = pnand %p171, %p172
      %p174 = pneg %p173
      // Predicated region
      $region25: #{tpu_custom_call.1} parent=5 // pred_check
        _
      $region26: #{tpu_custom_call.1} parent=5 // pred_check_branch
        %176 = sbr.rel (%p173) target = $region28
      $region27: #{tpu_custom_call.1} parent=5 // pred_region
        %s177 = ssub.s32 %s14, 1
        %s178 = sand.u32 %s50, 1
        %s179 = scalar_lea.sflag [#allocation4], %s178
        %s180 = sand.u32 %s50, 1
        %s181 = smul.addr %s180, 256
        %s182 = scalar_lea.vmem [#allocation3], %s181
        // Predicated region
        $region29: #{tpu_custom_call.1} parent=27 // pred_check
          %p183 = pneg %p63
        $region30: #{tpu_custom_call.1} parent=27 // pred_check_branch
          %185 = sbr.rel (%p183) target = $region32
        $region31: #{tpu_custom_call.1} parent=27 // pred_region
          %186 = dma.done %s179, 4096
        $region32: #{tpu_custom_call.1} parent=27 // pred_fallthru
          _
        %s187 = sand.u32 %s50, 1
        %s188 = scalar_lea.sflag [#allocation4], %s187
        %s189 = sand.u32 %s50, 1
        %s190 = smul.addr %s189, 256
        %s191 = scalar_lea.vmem [#allocation3], %s190
        %p192 = pneg %p63
        %p193 = pneg %p60
        %s194 = smul.u32 16, %s25
        %p195 = scmp.lt.s32.totalorder %s194, 31
        %s196 = scalar_select %p195, %s194, 31
        %s197 = smul.addr %s196, 8
        %s198 = scalar_lea.vmem %s1, %s197
        %p199 = pneg %p89
        %p200 = pneg %p86
        %p201 = pneg %p117
        %p202 = pneg %p114
        %s203 = sand.u32 %s104, 1
        %s204 = scalar_lea.sflag [#allocation5], %s203
        %s205 = sand.u32 %s104, 1
        %s206 = scalar_lea.vmem [#allocation6], %s205
        %s207 = smul.u32 16, %s25
        %s208 = smul.u32 2, %s26
        %s209 = smul.u32 16, %s25
        %p210 = scmp.lt.s32.totalorder %s209, 31
        %s211 = scalar_select %p210, %s209, 31
        %s212 = smul.addr %s211, 8
        %s213 = scalar_lea.vmem %s1, %s212
        %s214 = smul.u32 16, %s25
        %p215 = scmp.eq.s32.totalorder %s26, 0
        // Predicated region
        $region33: #{tpu_custom_call.1} parent=27 // pred_check
          %p216 = pneg %p215
        $region34: #{tpu_custom_call.1} parent=27 // pred_check_branch
          %218 = sbr.rel (%p216) target = $region36
        $region35: #{tpu_custom_call.1} parent=27 // pred_region
          %vm219 = vcmask 7168
          %220 = vst.msk [vmem:[#allocation2] sm:$0xff] %vm219, -inf
          %221 = vst.msk [vmem:[#allocation2 + $0x8] sm:$0xff] %vm219, -inf
          %222 = vst.msk [vmem:[#allocation2 + $0x10] sm:$0xff] %vm219, -inf
          %223 = vst.msk [vmem:[#allocation2 + $0x18] sm:$0xff] %vm219, -inf
          %224 = vst.msk [vmem:[#allocation2 + $0x20] sm:$0xff] %vm219, -inf
          %225 = vst.msk [vmem:[#allocation2 + $0x28] sm:$0xff] %vm219, -inf
          %226 = vst.msk [vmem:[#allocation2 + $0x30] sm:$0xff] %vm219, -inf
          %227 = vst.msk [vmem:[#allocation2 + $0x38] sm:$0xff] %vm219, -inf
          %228 = vst.msk [vmem:[#allocation2 + $0x40] sm:$0xff] %vm219, -inf
          %229 = vst.msk [vmem:[#allocation2 + $0x48] sm:$0xff] %vm219, -inf
          %230 = vst.msk [vmem:[#allocation2 + $0x50] sm:$0xff] %vm219, -inf
          %231 = vst.msk [vmem:[#allocation2 + $0x58] sm:$0xff] %vm219, -inf
          %232 = vst.msk [vmem:[#allocation2 + $0x60] sm:$0xff] %vm219, -inf
          %233 = vst.msk [vmem:[#allocation2 + $0x68] sm:$0xff] %vm219, -inf
          %234 = vst.msk [vmem:[#allocation2 + $0x70] sm:$0xff] %vm219, -inf
          %235 = vst.msk [vmem:[#allocation2 + $0x78] sm:$0xff] %vm219, -inf
        $region36: #{tpu_custom_call.1} parent=27 // pred_fallthru
          _
        %v236 = vld [vmem:[%s182] sm:$0xff]
        %v237 = vld [vmem:[%s182 + $0x8] sm:$0xff]
        %v238 = vld [vmem:[%s182 + $0x10] sm:$0xff]
        %v239 = vld [vmem:[%s182 + $0x18] sm:$0xff]
        %v240 = vld [vmem:[%s182 + $0x20] sm:$0xff]
        %v241 = vld [vmem:[%s182 + $0x28] sm:$0xff]
        %v242 = vld [vmem:[%s182 + $0x30] sm:$0xff]
        %v243 = vld [vmem:[%s182 + $0x38] sm:$0xff]
        %v244 = vld [vmem:[%s182 + $0x40] sm:$0xff]
        %v245 = vld [vmem:[%s182 + $0x48] sm:$0xff]
        %v246 = vld [vmem:[%s182 + $0x50] sm:$0xff]
        %v247 = vld [vmem:[%s182 + $0x58] sm:$0xff]
        %v248 = vld [vmem:[%s182 + $0x60] sm:$0xff]
        %v249 = vld [vmem:[%s182 + $0x68] sm:$0xff]
        %v250 = vld [vmem:[%s182 + $0x70] sm:$0xff]
        %v251 = vld [vmem:[%s182 + $0x78] sm:$0xff]
        %v252 = vld [vmem:[%s182 + $0x80] sm:$0xff]
        %v253 = vld [vmem:[%s182 + $0x88] sm:$0xff]
        %v254 = vld [vmem:[%s182 + $0x90] sm:$0xff]
        %v255 = vld [vmem:[%s182 + $0x98] sm:$0xff]
        %v256 = vld [vmem:[%s182 + $0xa0] sm:$0xff]
        %v257 = vld [vmem:[%s182 + $0xa8] sm:$0xff]
        %v258 = vld [vmem:[%s182 + $0xb0] sm:$0xff]
        %v259 = vld [vmem:[%s182 + $0xb8] sm:$0xff]
        %v260 = vld [vmem:[%s182 + $0xc0] sm:$0xff]
        %v261 = vld [vmem:[%s182 + $0xc8] sm:$0xff]
        %v262 = vld [vmem:[%s182 + $0xd0] sm:$0xff]
        %v263 = vld [vmem:[%s182 + $0xd8] sm:$0xff]
        %v264 = vld [vmem:[%s182 + $0xe0] sm:$0xff]
        %v265 = vld [vmem:[%s182 + $0xe8] sm:$0xff]
        %v266 = vld [vmem:[%s182 + $0xf0] sm:$0xff]
        %v267 = vld [vmem:[%s182 + $0xf8] sm:$0xff]
        %v268 = vmax.f32 %v236, %v237
        %269 = vmax.xlane.f32.xlu0 %v268
        %v270 = vpop.xlane.xlu0 %269
        %v271 = vmax.f32 %v238, %v239
        %272 = vmax.xlane.f32.xlu0 %v271
        %v273 = vpop.xlane.xlu0 %272
        %v274 = vmax.f32 %v240, %v241
        %275 = vmax.xlane.f32.xlu0 %v274
        %v276 = vpop.xlane.xlu0 %275
        %v277 = vmax.f32 %v242, %v243
        %278 = vmax.xlane.f32.xlu0 %v277
        %v279 = vpop.xlane.xlu0 %278
        %v280 = vmax.f32 %v244, %v245
        %281 = vmax.xlane.f32.xlu0 %v280
        %v282 = vpop.xlane.xlu0 %281
        %v283 = vmax.f32 %v246, %v247
        %284 = vmax.xlane.f32.xlu0 %v283
        %v285 = vpop.xlane.xlu0 %284
        %v286 = vmax.f32 %v248, %v249
        %287 = vmax.xlane.f32.xlu0 %v286
        %v288 = vpop.xlane.xlu0 %287
        %v289 = vmax.f32 %v250, %v251
        %290 = vmax.xlane.f32.xlu0 %v289
        %v291 = vpop.xlane.xlu0 %290
        %v292 = vmax.f32 %v252, %v253
        %293 = vmax.xlane.f32.xlu0 %v292
        %v294 = vpop.xlane.xlu0 %293
        %v295 = vmax.f32 %v254, %v255
        %296 = vmax.xlane.f32.xlu0 %v295
        %v297 = vpop.xlane.xlu0 %296
        %v298 = vmax.f32 %v256, %v257
        %299 = vmax.xlane.f32.xlu0 %v298
        %v300 = vpop.xlane.xlu0 %299
        %v301 = vmax.f32 %v258, %v259
        %302 = vmax.xlane.f32.xlu0 %v301
        %v303 = vpop.xlane.xlu0 %302
        %v304 = vmax.f32 %v260, %v261
        %305 = vmax.xlane.f32.xlu0 %v304
        %v306 = vpop.xlane.xlu0 %305
        %v307 = vmax.f32 %v262, %v263
        %308 = vmax.xlane.f32.xlu0 %v307
        %v309 = vpop.xlane.xlu0 %308
        %v310 = vmax.f32 %v264, %v265
        %311 = vmax.xlane.f32.xlu0 %v310
        %v312 = vpop.xlane.xlu0 %311
        %v313 = vmax.f32 %v266, %v267
        %314 = vmax.xlane.f32.xlu0 %v313
        %v315 = vpop.xlane.xlu0 %314
        %v316 = vld [vmem:[#allocation2] sm:$0xff]
        %v317 = vld [vmem:[#allocation2 + $0x8] sm:$0xff]
        %v318 = vld [vmem:[#allocation2 + $0x10] sm:$0xff]
        %v319 = vld [vmem:[#allocation2 + $0x18] sm:$0xff]
        %v320 = vld [vmem:[#allocation2 + $0x20] sm:$0xff]
        %v321 = vld [vmem:[#allocation2 + $0x28] sm:$0xff]
        %v322 = vld [vmem:[#allocation2 + $0x30] sm:$0xff]
        %v323 = vld [vmem:[#allocation2 + $0x38] sm:$0xff]
        %v324 = vld [vmem:[#allocation2 + $0x40] sm:$0xff]
        %v325 = vld [vmem:[#allocation2 + $0x48] sm:$0xff]
        %v326 = vld [vmem:[#allocation2 + $0x50] sm:$0xff]
        %v327 = vld [vmem:[#allocation2 + $0x58] sm:$0xff]
        %v328 = vld [vmem:[#allocation2 + $0x60] sm:$0xff]
        %v329 = vld [vmem:[#allocation2 + $0x68] sm:$0xff]
        %v330 = vld [vmem:[#allocation2 + $0x70] sm:$0xff]
        %v331 = vld [vmem:[#allocation2 + $0x78] sm:$0xff]
        %v332 = vmax.f32 %v316, %v270
        %v333 = vmax.f32 %v317, %v273
        %v334 = vmax.f32 %v318, %v276
        %v335 = vmax.f32 %v319, %v279
        %v336 = vmax.f32 %v320, %v282
        %v337 = vmax.f32 %v321, %v285
        %v338 = vmax.f32 %v322, %v288
        %v339 = vmax.f32 %v323, %v291
        %v340 = vmax.f32 %v324, %v294
        %v341 = vmax.f32 %v325, %v297
        %v342 = vmax.f32 %v326, %v300
        %v343 = vmax.f32 %v327, %v303
        %v344 = vmax.f32 %v328, %v306
        %v345 = vmax.f32 %v329, %v309
        %v346 = vmax.f32 %v330, %v312
        %v347 = vmax.f32 %v331, %v315
        %vm348 = vcmask 7168
        %349 = vst.msk [vmem:[#allocation2] sm:$0xff] %vm348, %v332
        %350 = vst.msk [vmem:[#allocation2 + $0x8] sm:$0xff] %vm348, %v333
        %351 = vst.msk [vmem:[#allocation2 + $0x10] sm:$0xff] %vm348, %v334
        %352 = vst.msk [vmem:[#allocation2 + $0x18] sm:$0xff] %vm348, %v335
        %353 = vst.msk [vmem:[#allocation2 + $0x20] sm:$0xff] %vm348, %v336
        %354 = vst.msk [vmem:[#allocation2 + $0x28] sm:$0xff] %vm348, %v337
        %355 = vst.msk [vmem:[#allocation2 + $0x30] sm:$0xff] %vm348, %v338
        %356 = vst.msk [vmem:[#allocation2 + $0x38] sm:$0xff] %vm348, %v339
        %357 = vst.msk [vmem:[#allocation2 + $0x40] sm:$0xff] %vm348, %v340
        %358 = vst.msk [vmem:[#allocation2 + $0x48] sm:$0xff] %vm348, %v341
        %359 = vst.msk [vmem:[#allocation2 + $0x50] sm:$0xff] %vm348, %v342
        %360 = vst.msk [vmem:[#allocation2 + $0x58] sm:$0xff] %vm348, %v343
        %361 = vst.msk [vmem:[#allocation2 + $0x60] sm:$0xff] %vm348, %v344
        %362 = vst.msk [vmem:[#allocation2 + $0x68] sm:$0xff] %vm348, %v345
        %363 = vst.msk [vmem:[#allocation2 + $0x70] sm:$0xff] %vm348, %v346
        %364 = vst.msk [vmem:[#allocation2 + $0x78] sm:$0xff] %vm348, %v347
        // Predicated region
        $region37: #{tpu_custom_call.1} parent=27 // pred_check
          %p365 = pneg %p215
        $region38: #{tpu_custom_call.1} parent=27 // pred_check_branch
          %367 = sbr.rel (%p365) target = $region40
        $region39: #{tpu_custom_call.1} parent=27 // pred_region
          %v368 = vld [vmem:[#allocation2] sm:$0xff]
          %v369 = vld [vmem:[#allocation2 + $0x8] sm:$0xff]
          %v370 = vld [vmem:[#allocation2 + $0x10] sm:$0xff]
          %v371 = vld [vmem:[#allocation2 + $0x18] sm:$0xff]
          %v372 = vld [vmem:[#allocation2 + $0x20] sm:$0xff]
          %v373 = vld [vmem:[#allocation2 + $0x28] sm:$0xff]
          %v374 = vld [vmem:[#allocation2 + $0x30] sm:$0xff]
          %v375 = vld [vmem:[#allocation2 + $0x38] sm:$0xff]
          %v376 = vld [vmem:[#allocation2 + $0x40] sm:$0xff]
          %v377 = vld [vmem:[#allocation2 + $0x48] sm:$0xff]
          %v378 = vld [vmem:[#allocation2 + $0x50] sm:$0xff]
          %v379 = vld [vmem:[#allocation2 + $0x58] sm:$0xff]
          %v380 = vld [vmem:[#allocation2 + $0x60] sm:$0xff]
          %v381 = vld [vmem:[#allocation2 + $0x68] sm:$0xff]
          %v382 = vld [vmem:[#allocation2 + $0x70] sm:$0xff]
          %v383 = vld [vmem:[#allocation2 + $0x78] sm:$0xff]
          %v384 = vld [vmem:[%s213] sm:$0xff]
          %v385 = vld [vmem:[%s213 + $0x8] sm:$0xff]
          %v386 = vld [vmem:[%s213 + $0x10] sm:$0xff]
          %v387 = vld [vmem:[%s213 + $0x18] sm:$0xff]
          %v388 = vld [vmem:[%s213 + $0x20] sm:$0xff]
          %v389 = vld [vmem:[%s213 + $0x28] sm:$0xff]
          %v390 = vld [vmem:[%s213 + $0x30] sm:$0xff]
          %v391 = vld [vmem:[%s213 + $0x38] sm:$0xff]
          %v392 = vld [vmem:[%s213 + $0x40] sm:$0xff]
          %v393 = vld [vmem:[%s213 + $0x48] sm:$0xff]
          %v394 = vld [vmem:[%s213 + $0x50] sm:$0xff]
          %v395 = vld [vmem:[%s213 + $0x58] sm:$0xff]
          %v396 = vld [vmem:[%s213 + $0x60] sm:$0xff]
          %v397 = vld [vmem:[%s213 + $0x68] sm:$0xff]
          %v398 = vld [vmem:[%s213 + $0x70] sm:$0xff]
          %v399 = vld [vmem:[%s213 + $0x78] sm:$0xff]
          %401 = vset.pattern.permute.xlu0 0
          %402 = vperm.xlu0 %401, %v368
          %v403 = vpop.permute.xlu0 %402
          %406 = vset.pattern.permute.xlu0 0
          %407 = vperm.xlu0 %406, %v369
          %v408 = vpop.permute.xlu0 %407
          %411 = vset.pattern.permute.xlu0 0
          %412 = vperm.xlu0 %411, %v370
          %v413 = vpop.permute.xlu0 %412
          %416 = vset.pattern.permute.xlu0 0
          %417 = vperm.xlu0 %416, %v371
          %v418 = vpop.permute.xlu0 %417
          %421 = vset.pattern.permute.xlu0 0
          %422 = vperm.xlu0 %421, %v372
          %v423 = vpop.permute.xlu0 %422
          %426 = vset.pattern.permute.xlu0 0
          %427 = vperm.xlu0 %426, %v373
          %v428 = vpop.permute.xlu0 %427
          %431 = vset.pattern.permute.xlu0 0
          %432 = vperm.xlu0 %431, %v374
          %v433 = vpop.permute.xlu0 %432
          %436 = vset.pattern.permute.xlu0 0
          %437 = vperm.xlu0 %436, %v375
          %v438 = vpop.permute.xlu0 %437
          %441 = vset.pattern.permute.xlu0 0
          %442 = vperm.xlu0 %441, %v376
          %v443 = vpop.permute.xlu0 %442
          %446 = vset.pattern.permute.xlu0 0
          %447 = vperm.xlu0 %446, %v377
          %v448 = vpop.permute.xlu0 %447
          %451 = vset.pattern.permute.xlu0 0
          %452 = vperm.xlu0 %451, %v378
          %v453 = vpop.permute.xlu0 %452
          %456 = vset.pattern.permute.xlu0 0
          %457 = vperm.xlu0 %456, %v379
          %v458 = vpop.permute.xlu0 %457
          %461 = vset.pattern.permute.xlu0 0
          %462 = vperm.xlu0 %461, %v380
          %v463 = vpop.permute.xlu0 %462
          %466 = vset.pattern.permute.xlu0 0
          %467 = vperm.xlu0 %466, %v381
          %v468 = vpop.permute.xlu0 %467
          %471 = vset.pattern.permute.xlu0 0
          %472 = vperm.xlu0 %471, %v382
          %v473 = vpop.permute.xlu0 %472
          %476 = vset.pattern.permute.xlu0 0
          %477 = vperm.xlu0 %476, %v383
          %v478 = vpop.permute.xlu0 %477
          %v480 = vmul.f32 %v403, %v384
          %v481 = vmul.f32 %v408, %v385
          %v482 = vmul.f32 %v413, %v386
          %v483 = vmul.f32 %v418, %v387
          %v484 = vmul.f32 %v423, %v388
          %v485 = vmul.f32 %v428, %v389
          %v486 = vmul.f32 %v433, %v390
          %v487 = vmul.f32 %v438, %v391
          %v488 = vmul.f32 %v443, %v392
          %v489 = vmul.f32 %v448, %v393
          %v490 = vmul.f32 %v453, %v394
          %v491 = vmul.f32 %v458, %v395
          %v492 = vmul.f32 %v463, %v396
          %v493 = vmul.f32 %v468, %v397
          %v494 = vmul.f32 %v473, %v398
          %v495 = vmul.f32 %v478, %v399
          %vm496 = vcmask 31744
          %v497 = vsel %vm496, %v480, 0.0
          %v498 = vsel %vm496, %v481, 0.0
          %v499 = vadd.f32 %v497, %v498
          %v500 = vsel %vm496, %v482, 0.0
          %v501 = vadd.f32 %v499, %v500
          %v502 = vsel %vm496, %v483, 0.0
          %v503 = vadd.f32 %v501, %v502
          %v504 = vsel %vm496, %v484, 0.0
          %v505 = vadd.f32 %v503, %v504
          %v506 = vsel %vm496, %v485, 0.0
          %v507 = vadd.f32 %v505, %v506
          %v508 = vsel %vm496, %v486, 0.0
          %v509 = vadd.f32 %v507, %v508
          %v510 = vsel %vm496, %v487, 0.0
          %v511 = vadd.f32 %v509, %v510
          %v512 = vsel %vm496, %v488, 0.0
          %v513 = vadd.f32 %v511, %v512
          %v514 = vsel %vm496, %v489, 0.0
          %v515 = vadd.f32 %v513, %v514
          %v516 = vsel %vm496, %v490, 0.0
          %v517 = vadd.f32 %v515, %v516
          %v518 = vsel %vm496, %v491, 0.0
          %v519 = vadd.f32 %v517, %v518
          %v520 = vsel %vm496, %v492, 0.0
          %v521 = vadd.f32 %v519, %v520
          %v522 = vsel %vm496, %v493, 0.0
          %v523 = vadd.f32 %v521, %v522
          %v524 = vsel %vm496, %v494, 0.0
          %v525 = vadd.f32 %v523, %v524
          %v526 = vsel %vm496, %v495, 0.0
          %v527 = vadd.f32 %v525, %v526
          %v528 = vrot.slane %v527, 4
          %v529 = vadd.f32 %v527, %v528
          %v530 = vrot.slane %v529, 2
          %v531 = vadd.f32 %v529, %v530
          %v532 = vrot.slane %v531, 1
          %v533 = vadd.f32 %v531, %v532
          %vm534 = vcmask 24576
          %535 = vst.msk [vmem:[%s206] sm:$0x1] %vm534, %v533
        $region40: #{tpu_custom_call.1} parent=27 // pred_fallthru
          _
        %s536 = sand.u32 %s104, 1
        %s537 = scalar_lea.sflag [#allocation5], %s536
        %s538 = sand.u32 %s104, 1
        %s539 = scalar_lea.vmem [#allocation6], %s538
        // Predicated region
        $region41: #{tpu_custom_call.1} parent=27 // pred_check
          %p540 = pneg %p114
        $region42: #{tpu_custom_call.1} parent=27 // pred_check_branch
          %542 = sbr.rel (%p540) target = $region44
        $region43: #{tpu_custom_call.1} parent=27 // pred_region
          %s544 = ssub.s32 16, 16
          %545 = vsyncadd %s537, %s544
          %s546 = smul.addr %s24, 2
          %s547 = sadd.s32 %s25, %s546
          %s548 = smul.addr %s547, 16
          %s549 = scalar_lea.hbm %s2, %s548
          %s551 = sshll.u32 %s539, 4
          %s552 = int_to_ptr.vmem [resolvable:$true] %s551
          %554 = dma.vmem_to_hbm [thread:$0]  %s552, 16, %s549, %s537
        $region44: #{tpu_custom_call.1} parent=27 // pred_fallthru
          _
      $region28: #{tpu_custom_call.1} parent=5 // pred_fallthru
        _
      %p555 = scmp.le.s32.totalorder 2, %s14
      // Predicated region
      $region45: #{tpu_custom_call.1} parent=5 // pred_check
        %p556 = pneg %p555
      $region46: #{tpu_custom_call.1} parent=5 // pred_check_branch
        %558 = sbr.rel (%p556) target = $region48
      $region47: #{tpu_custom_call.1} parent=5 // pred_region
        %s559 = ssub.s32 %s14, 2
        // Predicated region
        $region49: #{tpu_custom_call.1} parent=47 // pred_check
          %p560 = pneg %p120
        $region50: #{tpu_custom_call.1} parent=47 // pred_check_branch
          %562 = sbr.rel (%p560) target = $region52
        $region51: #{tpu_custom_call.1} parent=47 // pred_region
          %s563 = sand.u32 %s105, 1
          %s564 = scalar_lea.sflag [#allocation5], %s563
          %s565 = sand.u32 %s105, 1
          %s566 = scalar_lea.vmem [#allocation6], %s565
          %567 = dma.done %s564, 16
        $region52: #{tpu_custom_call.1} parent=47 // pred_fallthru
          _
      $region48: #{tpu_custom_call.1} parent=5 // pred_fallthru
        _
    $region6: #{tpu_custom_call.1} parent=1 // loop_footer
      %s18 = sadd.s32 1, %s14
    $region7: #{tpu_custom_call.1} parent=1 // loop_footer_branch
      %13 = sbr.rel target = $region3
    $region8: #{tpu_custom_call.1} parent=1 // loop_exit
      _
    %568 = vsyncpa [#allocation4], 1
    %s569 = scalar_lea.sflag [#allocation4], 1
    %570 = vsyncpa %s569, 1
    %571 = vsyncpa [#allocation5], 1
    %s572 = scalar_lea.sflag [#allocation5], 1
    %573 = vsyncpa %s572, 1

</llo_original>
